<compile_context>
chip_gen: v5e
topology: v5e:2x2
jax: 0.10.0
libtpu: 0.0.40
codegen_flags: <defaults>
</compile_context>

<pallas_src>
import jax
import jax.numpy as jnp
from jax.experimental import pallas as pl
from jax.experimental.pallas import tpu as pltpu


def _mul_conv1x1_kernel(x_ref, s_ref, w_ref, o_ref):
    # x_ref: (Cin, HW) f32   s_ref: (1, Cin) f32   w_ref: (Cout, Cin) bf16
    # o_ref: (Cout, HW) f32
    # Fold the broadcast scale into the weight along its lane axis (VPU, plenty of slack),
    # then do one MXU matmul with f32 accumulation.
    ws = (w_ref[...].astype(jnp.float32) * s_ref[...]).astype(jnp.bfloat16)   # (Cout, Cin)
    xb = x_ref[...].astype(jnp.bfloat16)                                      # (Cin, HW)
    o_ref[...] = jnp.dot(ws, xb, preferred_element_type=jnp.float32).astype(o_ref.dtype)


def prepare_conv_weight(weight_oihw):
    """One-time parameter prep: (Cout, Cin, 1, 1) -> (Cout, Cin) bf16.

    In a real network this happens once at init, not per forward call.
    """
    Cout, Cin = weight_oihw.shape[0], weight_oihw.shape[1]
    return weight_oihw.reshape(Cout, Cin).astype(jnp.bfloat16)


def mul_conv1x1(x_nchw, scale_nc11, w2d_bf16):
    """out = Conv2d_1x1(weight)(x * scale), all in NCHW. Batch must be 1 (matches the module)."""
    N, Cin, H, W = x_nchw.shape
    Cout = w2d_bf16.shape[0]
    assert N == 1, "kernel written for batch 1 (matches the reference module)"
    assert w2d_bf16.shape == (Cout, Cin)
    HW = H * W

    # Glue reshapes only -- no transposes, no extra HBM passes over the data.
    x2d = x_nchw.reshape(Cin, HW)          # (Cin, HW)
    s2d = scale_nc11.reshape(1, Cin)       # (1, Cin)  lane-dense

    cost = pl.CostEstimate(
        flops=2 * Cout * Cin * HW + Cout * Cin,     # matmul + scale fold
        transcendentals=0,
        bytes_accessed=(Cin * HW * 4) + (Cin * 4) + (Cout * Cin * 2) + (Cout * HW * 4),
    )

    out2d = pl.pallas_call(
        _mul_conv1x1_kernel,
        out_shape=jax.ShapeDtypeStruct((Cout, HW), x_nchw.dtype),
        grid=(1,),
        in_specs=[
            pl.BlockSpec((Cin, HW), lambda i: (0, 0)),
            pl.BlockSpec((1, Cin), lambda i: (0, 0)),
            pl.BlockSpec((Cout, Cin), lambda i: (0, 0)),
        ],
        out_specs=pl.BlockSpec((Cout, HW), lambda i: (0, 0)),
        cost_estimate=cost,
    )(x2d, s2d, w2d_bf16)

    return out2d.reshape(N, Cout, H, W)


if __name__ == "__main__":
    key = jax.random.PRNGKey(0)
    k1, k2, k3 = jax.random.split(key, 3)

    N, Cin, H, W, Cout = 1, 816, 7, 7, 232

    x281 = jax.random.normal(k1, (N, Cin, H, W), dtype=jnp.float32)   # feature map
    x286 = jax.random.normal(k2, (N, Cin, 1, 1), dtype=jnp.float32)   # SE-style scale
    # deterministic init for Conv2d(816, 232, 1, 1, bias=False)
    weight = (jax.random.normal(k3, (Cout, Cin, 1, 1), dtype=jnp.float32)
              * (1.0 / jnp.sqrt(Cin)))

    # One-time parameter prep (hoisted out of the per-call path).
    w2d = prepare_conv_weight(weight)

    out = mul_conv1x1(x281, x286, w2d)
    jax.block_until_ready(out)
    assert out.shape == (N, Cout, H, W)

    # Tight check: reference using the same bf16-rounded operands, f32 math.
    ws_b = ((w2d.astype(jnp.float32) * x286.reshape(1, Cin))
            .astype(jnp.bfloat16).astype(jnp.float32))                       # (Cout, Cin)
    xb_b = x281.reshape(Cin, H * W).astype(jnp.bfloat16).astype(jnp.float32)  # (Cin, HW)
    ref_b = jnp.dot(ws_b, xb_b,
                    precision=jax.lax.Precision.HIGHEST).reshape(N, Cout, H, W)
    assert jnp.allclose(out, ref_b, atol=2e-3, rtol=2e-3), \
        float(jnp.max(jnp.abs(out - ref_b)))

    # Looser check against the pure-f32 reference (bf16 operand rounding only).
    ref_f32 = jnp.einsum("oc,nchw->nohw", weight.reshape(Cout, Cin), x281 * x286,
                         precision=jax.lax.Precision.HIGHEST)
    assert jnp.allclose(out, ref_f32, atol=2e-2, rtol=2e-2), \
        float(jnp.max(jnp.abs(out - ref_f32)))

    print("KERNEL_OK")
</pallas_src>

<mosaic_0001>
module attributes {stable_mosaic.version = 11 : i64} {
  func.func @_mul_conv1x1_kernel(%arg0: i32, %arg1: memref<816x49xf32, #tpu.memory_space<vmem>>, %arg2: memref<1x816xf32, #tpu.memory_space<vmem>>, %arg3: memref<232x816xbf16, #tpu.memory_space<vmem>>, %arg4: memref<232x49xf32, #tpu.memory_space<vmem>>) attributes {dimension_semantics = [#tpu.dimension_semantics<arbitrary>], iteration_bounds = array<i64: 1>, scalar_prefetch = 0 : i64, scratch_operands = 0 : i64, tpu.core_type = #tpu.core_type<tc>, window_params = [{pipeline_mode = #tpu.pipeline_mode<synchronous>, transform_indices = @transform_0, window_bounds = array<i64: 816, 49>}, {pipeline_mode = #tpu.pipeline_mode<synchronous>, transform_indices = @transform_1, window_bounds = array<i64: 1, 816>}, {pipeline_mode = #tpu.pipeline_mode<synchronous>, transform_indices = @transform_2, window_bounds = array<i64: 232, 816>}, {pipeline_mode = #tpu.pipeline_mode<synchronous>, transform_indices = @transform_3, window_bounds = array<i64: 232, 49>}]} {
    %c0 = arith.constant 0 : index
    %c0_0 = arith.constant 0 : index
    %0 = vector.load %arg3[%c0, %c0_0] : memref<232x816xbf16, #tpu.memory_space<vmem>>, vector<232x816xbf16>
    %1 = arith.extf %0 : vector<232x816xbf16> to vector<232x816xf32>
    %c0_1 = arith.constant 0 : index
    %c0_2 = arith.constant 0 : index
    %2 = vector.load %arg2[%c0_1, %c0_2] : memref<1x816xf32, #tpu.memory_space<vmem>>, vector<1x816xf32>
    %3 = vector.broadcast %2 : vector<1x816xf32> to vector<232x816xf32>
    %4 = arith.mulf %1, %3 : vector<232x816xf32>
    %5 = arith.truncf %4 : vector<232x816xf32> to vector<232x816xbf16>
    %c0_3 = arith.constant 0 : index
    %c0_4 = arith.constant 0 : index
    %6 = vector.load %arg1[%c0_3, %c0_4] : memref<816x49xf32, #tpu.memory_space<vmem>>, vector<816x49xf32>
    %7 = arith.truncf %6 : vector<816x49xf32> to vector<816x49xbf16>
    %cst = arith.constant dense<0.000000e+00> : vector<232x49xf32>
    %8 = tpu.matmul %5, %7, %cst {dimension_numbers = #tpu.dot_dimension_numbers<[1], [0], [0], [1], [0, 0, 1, 1], [], []>} : vector<232x816xbf16>, vector<816x49xbf16>, vector<232x49xf32> -> vector<232x49xf32>
    %c0_5 = arith.constant 0 : index
    %c0_6 = arith.constant 0 : index
    %9 = vector.load %arg4[%c0_5, %c0_6] : memref<232x49xf32, #tpu.memory_space<vmem>>, vector<232x49xf32>
    tpu.vector_store %arg4[%c0_5, %c0_6], %8 {strides = array<i32>} : memref<232x49xf32, #tpu.memory_space<vmem>>, vector<232x49xf32>,
    return
  }
  func.func @transform_0(%arg0: i32) -> (i32, i32) {
    %c0_i32 = arith.constant 0 : i32
    %c0_i32_0 = arith.constant 0 : i32
    %c0_i32_1 = arith.constant 0 : i32
    return %c0_i32, %c0_i32_0 : i32, i32
  }
  func.func @transform_1(%arg0: i32) -> (i32, i32) {
    %c0_i32 = arith.constant 0 : i32
    %c0_i32_0 = arith.constant 0 : i32
    %c0_i32_1 = arith.constant 0 : i32
    return %c0_i32, %c0_i32_0 : i32, i32
  }
  func.func @transform_2(%arg0: i32) -> (i32, i32) {
    %c0_i32 = arith.constant 0 : i32
    %c0_i32_0 = arith.constant 0 : i32
    %c0_i32_1 = arith.constant 0 : i32
    return %c0_i32, %c0_i32_0 : i32, i32
  }
  func.func @transform_3(%arg0: i32) -> (i32, i32) {
    %c0_i32 = arith.constant 0 : i32
    %c0_i32_0 = arith.constant 0 : i32
    %c0_i32_1 = arith.constant 0 : i32
    return %c0_i32, %c0_i32_0 : i32, i32
  }
}

</mosaic_0001>

<llo_original>
// kernel: tpu_custom_call.1
$region0: #{tpu_custom_call.1}
  #allocation0 [shape = 'u32[]', space=smem, size = 0x4, offset = 0x4, fixed_abs, tag = 'smem constant byte address 0x4 - core index']
  #allocation1 [shape = 'u32[72,128]{1,0:T(1,128)}', space=vmem, size = 0x9000, scoped, tag = 'internal scratch']
  %s0 = inlined_call_operand.vmem [shape: f32[816,49], index: 0, kind: input, shape index: {}]
  %s1 = inlined_call_operand.vmem [shape: f32[1,816], index: 1, kind: input, shape index: {}]
  %s2 = inlined_call_operand.vmem [shape: bf16[232,816], index: 2, kind: input, shape index: {}]
  %s3 = inlined_call_operand.vmem [shape: f32[232,49], index: 3, kind: output, shape index: {}]
  %s4 = sld [smem:[#allocation0]]
  $region22: #{tpu_custom_call.1} parent=0
    _
  %s6 = ssub.s32 1, %s4
  %s7 = scalar_select 0, %s6, %s4
  // Predicated region
  $region2: #{tpu_custom_call.1} parent=0 // pred_check
    _
  $region3: #{tpu_custom_call.1} parent=0 // pred_check_branch
    %9 = sbr.rel (0) target = $region5
  $region4: #{tpu_custom_call.1} parent=0 // pred_region
    _
  $region5: #{tpu_custom_call.1} parent=0 // pred_fallthru
    _
  // Predicated region
  $region6: #{tpu_custom_call.1} parent=0 // pred_check
    _
  $region7: #{tpu_custom_call.1} parent=0 // pred_check_branch
    %11 = sbr.rel (0) target = $region9
  $region8: #{tpu_custom_call.1} parent=0 // pred_region
    _
  $region9: #{tpu_custom_call.1} parent=0 // pred_fallthru
    _
  // Predicated region
  $region10: #{tpu_custom_call.1} parent=0 // pred_check
    _
  $region11: #{tpu_custom_call.1} parent=0 // pred_check_branch
    %13 = sbr.rel (0) target = $region13
  $region12: #{tpu_custom_call.1} parent=0 // pred_region
    _
  $region13: #{tpu_custom_call.1} parent=0 // pred_fallthru
    _
  %v15 = vld [vmem:[%s2] sm:$0xff]
  %v16 = vld [vmem:[%s2 + $0x8] sm:$0xff]
  %v17 = vld [vmem:[%s2 + $0x10] sm:$0xff]
  %v18 = vld [vmem:[%s2 + $0x18] sm:$0xf]
  %v19 = vld [vmem:[%s2 + $0x1c] sm:$0xff]
  %v20 = vld [vmem:[%s2 + $0x24] sm:$0xff]
  %v21 = vld [vmem:[%s2 + $0x2c] sm:$0xff]
  %v22 = vld [vmem:[%s2 + $0x34] sm:$0xf]
  %v23 = vld [vmem:[%s2 + $0x38] sm:$0xff]
  %v24 = vld [vmem:[%s2 + $0x40] sm:$0xff]
  %v25 = vld [vmem:[%s2 + $0x48] sm:$0xff]
  %v26 = vld [vmem:[%s2 + $0x50] sm:$0xf]
  %v27 = vld [vmem:[%s2 + $0x54] sm:$0xff]
  %v28 = vld [vmem:[%s2 + $0x5c] sm:$0xff]
  %v29 = vld [vmem:[%s2 + $0x64] sm:$0xff]
  %v30 = vld [vmem:[%s2 + $0x6c] sm:$0xf]
  %v31 = vld [vmem:[%s2 + $0x70] sm:$0xff]
  %v32 = vld [vmem:[%s2 + $0x78] sm:$0xff]
  %v33 = vld [vmem:[%s2 + $0x80] sm:$0xff]
  %v34 = vld [vmem:[%s2 + $0x88] sm:$0xf]
  %v35 = vld [vmem:[%s2 + $0x8c] sm:$0xff]
  %v36 = vld [vmem:[%s2 + $0x94] sm:$0xff]
  %v37 = vld [vmem:[%s2 + $0x9c] sm:$0xff]
  %v38 = vld [vmem:[%s2 + $0xa4] sm:$0xf]
  %v39 = vld [vmem:[%s2 + $0xa8] sm:$0xff]
  %v40 = vld [vmem:[%s2 + $0xb0] sm:$0xff]
  %v41 = vld [vmem:[%s2 + $0xb8] sm:$0xff]
  %v42 = vld [vmem:[%s2 + $0xc0] sm:$0xf]
  %v43 = vld [vmem:[%s2 + $0xc4] sm:$0xff]
  %v44 = vld [vmem:[%s2 + $0xcc] sm:$0xff]
  %v45 = vld [vmem:[%s2 + $0xd4] sm:$0xff]
  %v46 = vld [vmem:[%s2 + $0xdc] sm:$0xf]
  %v47 = vld [vmem:[%s2 + $0xe0] sm:$0xff]
  %v48 = vld [vmem:[%s2 + $0xe8] sm:$0xff]
  %v49 = vld [vmem:[%s2 + $0xf0] sm:$0xff]
  %v50 = vld [vmem:[%s2 + $0xf8] sm:$0xf]
  %v51 = vld [vmem:[%s2 + $0xfc] sm:$0xff]
  %v52 = vld [vmem:[%s2 + $0x104] sm:$0xff]
  %v53 = vld [vmem:[%s2 + $0x10c] sm:$0xff]
  %v54 = vld [vmem:[%s2 + $0x114] sm:$0xf]
  %v55 = vld [vmem:[%s2 + $0x118] sm:$0xff]
  %v56 = vld [vmem:[%s2 + $0x120] sm:$0xff]
  %v57 = vld [vmem:[%s2 + $0x128] sm:$0xff]
  %v58 = vld [vmem:[%s2 + $0x130] sm:$0xf]
  %v59 = vld [vmem:[%s2 + $0x134] sm:$0xff]
  %v60 = vld [vmem:[%s2 + $0x13c] sm:$0xff]
  %v61 = vld [vmem:[%s2 + $0x144] sm:$0xff]
  %v62 = vld [vmem:[%s2 + $0x14c] sm:$0xf]
  %v63 = vld [vmem:[%s2 + $0x150] sm:$0xff]
  %v64 = vld [vmem:[%s2 + $0x158] sm:$0xff]
  %v65 = vld [vmem:[%s2 + $0x160] sm:$0xff]
  %v66 = vld [vmem:[%s2 + $0x168] sm:$0xf]
  %v67 = vld [vmem:[%s2 + $0x16c] sm:$0xff]
  %v68 = vld [vmem:[%s2 + $0x174] sm:$0xff]
  %v69 = vld [vmem:[%s2 + $0x17c] sm:$0xff]
  %v70 = vld [vmem:[%s2 + $0x184] sm:$0xf]
  %v71 = vld [vmem:[%s2 + $0x188] sm:$0xff]
  %v72 = vld [vmem:[%s2 + $0x190] sm:$0xff]
  %v73 = vld [vmem:[%s2 + $0x198] sm:$0xff]
  %v74 = vld [vmem:[%s2 + $0x1a0] sm:$0xf]
  %v75 = vld [vmem:[%s2 + $0x1a4] sm:$0xff]
  %v76 = vld [vmem:[%s2 + $0x1ac] sm:$0xff]
  %v77 = vld [vmem:[%s2 + $0x1b4] sm:$0xff]
  %v78 = vld [vmem:[%s2 + $0x1bc] sm:$0xf]
  %v79 = vld [vmem:[%s2 + $0x1c0] sm:$0xff]
  %v80 = vld [vmem:[%s2 + $0x1c8] sm:$0xff]
  %v81 = vld [vmem:[%s2 + $0x1d0] sm:$0xff]
  %v82 = vld [vmem:[%s2 + $0x1d8] sm:$0xf]
  %v83 = vld [vmem:[%s2 + $0x1dc] sm:$0xff]
  %v84 = vld [vmem:[%s2 + $0x1e4] sm:$0xff]
  %v85 = vld [vmem:[%s2 + $0x1ec] sm:$0xff]
  %v86 = vld [vmem:[%s2 + $0x1f4] sm:$0xf]
  %v87 = vld [vmem:[%s2 + $0x1f8] sm:$0xff]
  %v88 = vld [vmem:[%s2 + $0x200] sm:$0xff]
  %v89 = vld [vmem:[%s2 + $0x208] sm:$0xff]
  %v90 = vld [vmem:[%s2 + $0x210] sm:$0xf]
  %v91 = vld [vmem:[%s2 + $0x214] sm:$0xff]
  %v92 = vld [vmem:[%s2 + $0x21c] sm:$0xff]
  %v93 = vld [vmem:[%s2 + $0x224] sm:$0xff]
  %v94 = vld [vmem:[%s2 + $0x22c] sm:$0xf]
  %v95 = vld [vmem:[%s2 + $0x230] sm:$0xff]
  %v96 = vld [vmem:[%s2 + $0x238] sm:$0xff]
  %v97 = vld [vmem:[%s2 + $0x240] sm:$0xff]
  %v98 = vld [vmem:[%s2 + $0x248] sm:$0xf]
  %v99 = vld [vmem:[%s2 + $0x24c] sm:$0xff]
  %v100 = vld [vmem:[%s2 + $0x254] sm:$0xff]
  %v101 = vld [vmem:[%s2 + $0x25c] sm:$0xff]
  %v102 = vld [vmem:[%s2 + $0x264] sm:$0xf]
  %v103 = vld [vmem:[%s2 + $0x268] sm:$0xff]
  %v104 = vld [vmem:[%s2 + $0x270] sm:$0xff]
  %v105 = vld [vmem:[%s2 + $0x278] sm:$0xff]
  %v106 = vld [vmem:[%s2 + $0x280] sm:$0xf]
  %v107 = vld [vmem:[%s2 + $0x284] sm:$0xff]
  %v108 = vld [vmem:[%s2 + $0x28c] sm:$0xff]
  %v109 = vld [vmem:[%s2 + $0x294] sm:$0xff]
  %v110 = vld [vmem:[%s2 + $0x29c] sm:$0xf]
  %v111 = vld [vmem:[%s2 + $0x2a0] sm:$0xff]
  %v112 = vld [vmem:[%s2 + $0x2a8] sm:$0xff]
  %v113 = vld [vmem:[%s2 + $0x2b0] sm:$0xff]
  %v114 = vld [vmem:[%s2 + $0x2b8] sm:$0xf]
  %v115 = vld [vmem:[%s2 + $0x2bc] sm:$0xff]
  %v116 = vld [vmem:[%s2 + $0x2c4] sm:$0xff]
  %v117 = vld [vmem:[%s2 + $0x2cc] sm:$0xff]
  %v118 = vld [vmem:[%s2 + $0x2d4] sm:$0xf]
  %v119 = vld [vmem:[%s2 + $0x2d8] sm:$0xff]
  %v120 = vld [vmem:[%s2 + $0x2e0] sm:$0xff]
  %v121 = vld [vmem:[%s2 + $0x2e8] sm:$0xff]
  %v122 = vld [vmem:[%s2 + $0x2f0] sm:$0xf]
  %v123 = vld [vmem:[%s2 + $0x2f4] sm:$0xff]
  %v124 = vld [vmem:[%s2 + $0x2fc] sm:$0xff]
  %v125 = vld [vmem:[%s2 + $0x304] sm:$0xff]
  %v126 = vld [vmem:[%s2 + $0x30c] sm:$0xf]
  %v127 = vld [vmem:[%s2 + $0x310] sm:$0xff]
  %v128 = vld [vmem:[%s2 + $0x318] sm:$0xff]
  %v129 = vld [vmem:[%s2 + $0x320] sm:$0xff]
  %v130 = vld [vmem:[%s2 + $0x328] sm:$0xf]
  %v131 = vunpack.c.l.bf16 %v15
  %v132 = vunpack.c.h.bf16 %v15
  %v133 = vunpack.c.l.bf16 %v16
  %v134 = vunpack.c.h.bf16 %v16
  %v135 = vunpack.c.l.bf16 %v17
  %v136 = vunpack.c.h.bf16 %v17
  %v137 = vunpack.c.l.bf16 %v18
  %v138 = vunpack.c.l.bf16 %v19
  %v139 = vunpack.c.h.bf16 %v19
  %v140 = vunpack.c.l.bf16 %v20
  %v141 = vunpack.c.h.bf16 %v20
  %v142 = vunpack.c.l.bf16 %v21
  %v143 = vunpack.c.h.bf16 %v21
  %v144 = vunpack.c.l.bf16 %v22
  %v145 = vunpack.c.l.bf16 %v23
  %v146 = vunpack.c.h.bf16 %v23
  %v147 = vunpack.c.l.bf16 %v24
  %v148 = vunpack.c.h.bf16 %v24
  %v149 = vunpack.c.l.bf16 %v25
  %v150 = vunpack.c.h.bf16 %v25
  %v151 = vunpack.c.l.bf16 %v26
  %v152 = vunpack.c.l.bf16 %v27
  %v153 = vunpack.c.h.bf16 %v27
  %v154 = vunpack.c.l.bf16 %v28
  %v155 = vunpack.c.h.bf16 %v28
  %v156 = vunpack.c.l.bf16 %v29
  %v157 = vunpack.c.h.bf16 %v29
  %v158 = vunpack.c.l.bf16 %v30
  %v159 = vunpack.c.l.bf16 %v31
  %v160 = vunpack.c.h.bf16 %v31
  %v161 = vunpack.c.l.bf16 %v32
  %v162 = vunpack.c.h.bf16 %v32
  %v163 = vunpack.c.l.bf16 %v33
  %v164 = vunpack.c.h.bf16 %v33
  %v165 = vunpack.c.l.bf16 %v34
  %v166 = vunpack.c.l.bf16 %v35
  %v167 = vunpack.c.h.bf16 %v35
  %v168 = vunpack.c.l.bf16 %v36
  %v169 = vunpack.c.h.bf16 %v36
  %v170 = vunpack.c.l.bf16 %v37
  %v171 = vunpack.c.h.bf16 %v37
  %v172 = vunpack.c.l.bf16 %v38
  %v173 = vunpack.c.l.bf16 %v39
  %v174 = vunpack.c.h.bf16 %v39
  %v175 = vunpack.c.l.bf16 %v40
  %v176 = vunpack.c.h.bf16 %v40
  %v177 = vunpack.c.l.bf16 %v41
  %v178 = vunpack.c.h.bf16 %v41
  %v179 = vunpack.c.l.bf16 %v42
  %v180 = vunpack.c.l.bf16 %v43
  %v181 = vunpack.c.h.bf16 %v43
  %v182 = vunpack.c.l.bf16 %v44
  %v183 = vunpack.c.h.bf16 %v44
  %v184 = vunpack.c.l.bf16 %v45
  %v185 = vunpack.c.h.bf16 %v45
  %v186 = vunpack.c.l.bf16 %v46
  %v187 = vunpack.c.l.bf16 %v47
  %v188 = vunpack.c.h.bf16 %v47
  %v189 = vunpack.c.l.bf16 %v48
  %v190 = vunpack.c.h.bf16 %v48
  %v191 = vunpack.c.l.bf16 %v49
  %v192 = vunpack.c.h.bf16 %v49
  %v193 = vunpack.c.l.bf16 %v50
  %v194 = vunpack.c.l.bf16 %v51
  %v195 = vunpack.c.h.bf16 %v51
  %v196 = vunpack.c.l.bf16 %v52
  %v197 = vunpack.c.h.bf16 %v52
  %v198 = vunpack.c.l.bf16 %v53
  %v199 = vunpack.c.h.bf16 %v53
  %v200 = vunpack.c.l.bf16 %v54
  %v201 = vunpack.c.l.bf16 %v55
  %v202 = vunpack.c.h.bf16 %v55
  %v203 = vunpack.c.l.bf16 %v56
  %v204 = vunpack.c.h.bf16 %v56
  %v205 = vunpack.c.l.bf16 %v57
  %v206 = vunpack.c.h.bf16 %v57
  %v207 = vunpack.c.l.bf16 %v58
  %v208 = vunpack.c.l.bf16 %v59
  %v209 = vunpack.c.h.bf16 %v59
  %v210 = vunpack.c.l.bf16 %v60
  %v211 = vunpack.c.h.bf16 %v60
  %v212 = vunpack.c.l.bf16 %v61
  %v213 = vunpack.c.h.bf16 %v61
  %v214 = vunpack.c.l.bf16 %v62
  %v215 = vunpack.c.l.bf16 %v63
  %v216 = vunpack.c.h.bf16 %v63
  %v217 = vunpack.c.l.bf16 %v64
  %v218 = vunpack.c.h.bf16 %v64
  %v219 = vunpack.c.l.bf16 %v65
  %v220 = vunpack.c.h.bf16 %v65
  %v221 = vunpack.c.l.bf16 %v66
  %v222 = vunpack.c.l.bf16 %v67
  %v223 = vunpack.c.h.bf16 %v67
  %v224 = vunpack.c.l.bf16 %v68
  %v225 = vunpack.c.h.bf16 %v68
  %v226 = vunpack.c.l.bf16 %v69
  %v227 = vunpack.c.h.bf16 %v69
  %v228 = vunpack.c.l.bf16 %v70
  %v229 = vunpack.c.l.bf16 %v71
  %v230 = vunpack.c.h.bf16 %v71
  %v231 = vunpack.c.l.bf16 %v72
  %v232 = vunpack.c.h.bf16 %v72
  %v233 = vunpack.c.l.bf16 %v73
  %v234 = vunpack.c.h.bf16 %v73
  %v235 = vunpack.c.l.bf16 %v74
  %v236 = vunpack.c.l.bf16 %v75
  %v237 = vunpack.c.h.bf16 %v75
  %v238 = vunpack.c.l.bf16 %v76
  %v239 = vunpack.c.h.bf16 %v76
  %v240 = vunpack.c.l.bf16 %v77
  %v241 = vunpack.c.h.bf16 %v77
  %v242 = vunpack.c.l.bf16 %v78
  %v243 = vunpack.c.l.bf16 %v79
  %v244 = vunpack.c.h.bf16 %v79
  %v245 = vunpack.c.l.bf16 %v80
  %v246 = vunpack.c.h.bf16 %v80
  %v247 = vunpack.c.l.bf16 %v81
  %v248 = vunpack.c.h.bf16 %v81
  %v249 = vunpack.c.l.bf16 %v82
  %v250 = vunpack.c.l.bf16 %v83
  %v251 = vunpack.c.h.bf16 %v83
  %v252 = vunpack.c.l.bf16 %v84
  %v253 = vunpack.c.h.bf16 %v84
  %v254 = vunpack.c.l.bf16 %v85
  %v255 = vunpack.c.h.bf16 %v85
  %v256 = vunpack.c.l.bf16 %v86
  %v257 = vunpack.c.l.bf16 %v87
  %v258 = vunpack.c.h.bf16 %v87
  %v259 = vunpack.c.l.bf16 %v88
  %v260 = vunpack.c.h.bf16 %v88
  %v261 = vunpack.c.l.bf16 %v89
  %v262 = vunpack.c.h.bf16 %v89
  %v263 = vunpack.c.l.bf16 %v90
  %v264 = vunpack.c.l.bf16 %v91
  %v265 = vunpack.c.h.bf16 %v91
  %v266 = vunpack.c.l.bf16 %v92
  %v267 = vunpack.c.h.bf16 %v92
  %v268 = vunpack.c.l.bf16 %v93
  %v269 = vunpack.c.h.bf16 %v93
  %v270 = vunpack.c.l.bf16 %v94
  %v271 = vunpack.c.l.bf16 %v95
  %v272 = vunpack.c.h.bf16 %v95
  %v273 = vunpack.c.l.bf16 %v96
  %v274 = vunpack.c.h.bf16 %v96
  %v275 = vunpack.c.l.bf16 %v97
  %v276 = vunpack.c.h.bf16 %v97
  %v277 = vunpack.c.l.bf16 %v98
  %v278 = vunpack.c.l.bf16 %v99
  %v279 = vunpack.c.h.bf16 %v99
  %v280 = vunpack.c.l.bf16 %v100
  %v281 = vunpack.c.h.bf16 %v100
  %v282 = vunpack.c.l.bf16 %v101
  %v283 = vunpack.c.h.bf16 %v101
  %v284 = vunpack.c.l.bf16 %v102
  %v285 = vunpack.c.l.bf16 %v103
  %v286 = vunpack.c.h.bf16 %v103
  %v287 = vunpack.c.l.bf16 %v104
  %v288 = vunpack.c.h.bf16 %v104
  %v289 = vunpack.c.l.bf16 %v105
  %v290 = vunpack.c.h.bf16 %v105
  %v291 = vunpack.c.l.bf16 %v106
  %v292 = vunpack.c.l.bf16 %v107
  %v293 = vunpack.c.h.bf16 %v107
  %v294 = vunpack.c.l.bf16 %v108
  %v295 = vunpack.c.h.bf16 %v108
  %v296 = vunpack.c.l.bf16 %v109
  %v297 = vunpack.c.h.bf16 %v109
  %v298 = vunpack.c.l.bf16 %v110
  %v299 = vunpack.c.l.bf16 %v111
  %v300 = vunpack.c.h.bf16 %v111
  %v301 = vunpack.c.l.bf16 %v112
  %v302 = vunpack.c.h.bf16 %v112
  %v303 = vunpack.c.l.bf16 %v113
  %v304 = vunpack.c.h.bf16 %v113
  %v305 = vunpack.c.l.bf16 %v114
  %v306 = vunpack.c.l.bf16 %v115
  %v307 = vunpack.c.h.bf16 %v115
  %v308 = vunpack.c.l.bf16 %v116
  %v309 = vunpack.c.h.bf16 %v116
  %v310 = vunpack.c.l.bf16 %v117
  %v311 = vunpack.c.h.bf16 %v117
  %v312 = vunpack.c.l.bf16 %v118
  %v313 = vunpack.c.l.bf16 %v119
  %v314 = vunpack.c.h.bf16 %v119
  %v315 = vunpack.c.l.bf16 %v120
  %v316 = vunpack.c.h.bf16 %v120
  %v317 = vunpack.c.l.bf16 %v121
  %v318 = vunpack.c.h.bf16 %v121
  %v319 = vunpack.c.l.bf16 %v122
  %v320 = vunpack.c.l.bf16 %v123
  %v321 = vunpack.c.h.bf16 %v123
  %v322 = vunpack.c.l.bf16 %v124
  %v323 = vunpack.c.h.bf16 %v124
  %v324 = vunpack.c.l.bf16 %v125
  %v325 = vunpack.c.h.bf16 %v125
  %v326 = vunpack.c.l.bf16 %v126
  %v327 = vunpack.c.l.bf16 %v127
  %v328 = vunpack.c.h.bf16 %v127
  %v329 = vunpack.c.l.bf16 %v128
  %v330 = vunpack.c.h.bf16 %v128
  %v331 = vunpack.c.l.bf16 %v129
  %v332 = vunpack.c.h.bf16 %v129
  %v333 = vunpack.c.l.bf16 %v130
  %v334 = vld [vmem:[%s1] sm:$0x7f]
  %v336 = vperm.slane %v334, 0
  %v337 = vperm.slane %v334, 1
  %v338 = vperm.slane %v334, 2
  %v339 = vperm.slane %v334, 3
  %v340 = vperm.slane %v334, 4
  %v341 = vperm.slane %v334, 5
  %v342 = vperm.slane %v334, 6
  %v350 = vmul.f32 %v131, %v336
  %v351 = vmul.f32 %v132, %v337
  %v352 = vmul.f32 %v133, %v338
  %v353 = vmul.f32 %v134, %v339
  %v354 = vmul.f32 %v135, %v340
  %v355 = vmul.f32 %v136, %v341
  %v356 = vmul.f32 %v137, %v342
  %v357 = vmul.f32 %v138, %v336
  %v358 = vmul.f32 %v139, %v337
  %v359 = vmul.f32 %v140, %v338
  %v360 = vmul.f32 %v141, %v339
  %v361 = vmul.f32 %v142, %v340
  %v362 = vmul.f32 %v143, %v341
  %v363 = vmul.f32 %v144, %v342
  %v364 = vmul.f32 %v145, %v336
  %v365 = vmul.f32 %v146, %v337
  %v366 = vmul.f32 %v147, %v338
  %v367 = vmul.f32 %v148, %v339
  %v368 = vmul.f32 %v149, %v340
  %v369 = vmul.f32 %v150, %v341
  %v370 = vmul.f32 %v151, %v342
  %v371 = vmul.f32 %v152, %v336
  %v372 = vmul.f32 %v153, %v337
  %v373 = vmul.f32 %v154, %v338
  %v374 = vmul.f32 %v155, %v339
  %v375 = vmul.f32 %v156, %v340
  %v376 = vmul.f32 %v157, %v341
  %v377 = vmul.f32 %v158, %v342
  %v378 = vmul.f32 %v159, %v336
  %v379 = vmul.f32 %v160, %v337
  %v380 = vmul.f32 %v161, %v338
  %v381 = vmul.f32 %v162, %v339
  %v382 = vmul.f32 %v163, %v340
  %v383 = vmul.f32 %v164, %v341
  %v384 = vmul.f32 %v165, %v342
  %v385 = vmul.f32 %v166, %v336
  %v386 = vmul.f32 %v167, %v337
  %v387 = vmul.f32 %v168, %v338
  %v388 = vmul.f32 %v169, %v339
  %v389 = vmul.f32 %v170, %v340
  %v390 = vmul.f32 %v171, %v341
  %v391 = vmul.f32 %v172, %v342
  %v392 = vmul.f32 %v173, %v336
  %v393 = vmul.f32 %v174, %v337
  %v394 = vmul.f32 %v175, %v338
  %v395 = vmul.f32 %v176, %v339
  %v396 = vmul.f32 %v177, %v340
  %v397 = vmul.f32 %v178, %v341
  %v398 = vmul.f32 %v179, %v342
  %v399 = vmul.f32 %v180, %v336
  %v400 = vmul.f32 %v181, %v337
  %v401 = vmul.f32 %v182, %v338
  %v402 = vmul.f32 %v183, %v339
  %v403 = vmul.f32 %v184, %v340
  %v404 = vmul.f32 %v185, %v341
  %v405 = vmul.f32 %v186, %v342
  %v406 = vmul.f32 %v187, %v336
  %v407 = vmul.f32 %v188, %v337
  %v408 = vmul.f32 %v189, %v338
  %v409 = vmul.f32 %v190, %v339
  %v410 = vmul.f32 %v191, %v340
  %v411 = vmul.f32 %v192, %v341
  %v412 = vmul.f32 %v193, %v342
  %v413 = vmul.f32 %v194, %v336
  %v414 = vmul.f32 %v195, %v337
  %v415 = vmul.f32 %v196, %v338
  %v416 = vmul.f32 %v197, %v339
  %v417 = vmul.f32 %v198, %v340
  %v418 = vmul.f32 %v199, %v341
  %v419 = vmul.f32 %v200, %v342
  %v420 = vmul.f32 %v201, %v336
  %v421 = vmul.f32 %v202, %v337
  %v422 = vmul.f32 %v203, %v338
  %v423 = vmul.f32 %v204, %v339
  %v424 = vmul.f32 %v205, %v340
  %v425 = vmul.f32 %v206, %v341
  %v426 = vmul.f32 %v207, %v342
  %v427 = vmul.f32 %v208, %v336
  %v428 = vmul.f32 %v209, %v337
  %v429 = vmul.f32 %v210, %v338
  %v430 = vmul.f32 %v211, %v339
  %v431 = vmul.f32 %v212, %v340
  %v432 = vmul.f32 %v213, %v341
  %v433 = vmul.f32 %v214, %v342
  %v434 = vmul.f32 %v215, %v336
  %v435 = vmul.f32 %v216, %v337
  %v436 = vmul.f32 %v217, %v338
  %v437 = vmul.f32 %v218, %v339
  %v438 = vmul.f32 %v219, %v340
  %v439 = vmul.f32 %v220, %v341
  %v440 = vmul.f32 %v221, %v342
  %v441 = vmul.f32 %v222, %v336
  %v442 = vmul.f32 %v223, %v337
  %v443 = vmul.f32 %v224, %v338
  %v444 = vmul.f32 %v225, %v339
  %v445 = vmul.f32 %v226, %v340
  %v446 = vmul.f32 %v227, %v341
  %v447 = vmul.f32 %v228, %v342
  %v448 = vmul.f32 %v229, %v336
  %v449 = vmul.f32 %v230, %v337
  %v450 = vmul.f32 %v231, %v338
  %v451 = vmul.f32 %v232, %v339
  %v452 = vmul.f32 %v233, %v340
  %v453 = vmul.f32 %v234, %v341
  %v454 = vmul.f32 %v235, %v342
  %v455 = vmul.f32 %v236, %v336
  %v456 = vmul.f32 %v237, %v337
  %v457 = vmul.f32 %v238, %v338
  %v458 = vmul.f32 %v239, %v339
  %v459 = vmul.f32 %v240, %v340
  %v460 = vmul.f32 %v241, %v341
  %v461 = vmul.f32 %v242, %v342
  %v462 = vmul.f32 %v243, %v336
  %v463 = vmul.f32 %v244, %v337
  %v464 = vmul.f32 %v245, %v338
  %v465 = vmul.f32 %v246, %v339
  %v466 = vmul.f32 %v247, %v340
  %v467 = vmul.f32 %v248, %v341
  %v468 = vmul.f32 %v249, %v342
  %v469 = vmul.f32 %v250, %v336
  %v470 = vmul.f32 %v251, %v337
  %v471 = vmul.f32 %v252, %v338
  %v472 = vmul.f32 %v253, %v339
  %v473 = vmul.f32 %v254, %v340
  %v474 = vmul.f32 %v255, %v341
  %v475 = vmul.f32 %v256, %v342
  %v476 = vmul.f32 %v257, %v336
  %v477 = vmul.f32 %v258, %v337
  %v478 = vmul.f32 %v259, %v338
  %v479 = vmul.f32 %v260, %v339
  %v480 = vmul.f32 %v261, %v340
  %v481 = vmul.f32 %v262, %v341
  %v482 = vmul.f32 %v263, %v342
  %v483 = vmul.f32 %v264, %v336
  %v484 = vmul.f32 %v265, %v337
  %v485 = vmul.f32 %v266, %v338
  %v486 = vmul.f32 %v267, %v339
  %v487 = vmul.f32 %v268, %v340
  %v488 = vmul.f32 %v269, %v341
  %v489 = vmul.f32 %v270, %v342
  %v490 = vmul.f32 %v271, %v336
  %v491 = vmul.f32 %v272, %v337
  %v492 = vmul.f32 %v273, %v338
  %v493 = vmul.f32 %v274, %v339
  %v494 = vmul.f32 %v275, %v340
  %v495 = vmul.f32 %v276, %v341
  %v496 = vmul.f32 %v277, %v342
  %v497 = vmul.f32 %v278, %v336
  %v498 = vmul.f32 %v279, %v337
  %v499 = vmul.f32 %v280, %v338
  %v500 = vmul.f32 %v281, %v339
  %v501 = vmul.f32 %v282, %v340
  %v502 = vmul.f32 %v283, %v341
  %v503 = vmul.f32 %v284, %v342
  %v504 = vmul.f32 %v285, %v336
  %v505 = vmul.f32 %v286, %v337
  %v506 = vmul.f32 %v287, %v338
  %v507 = vmul.f32 %v288, %v339
  %v508 = vmul.f32 %v289, %v340
  %v509 = vmul.f32 %v290, %v341
  %v510 = vmul.f32 %v291, %v342
  %v511 = vmul.f32 %v292, %v336
  %v512 = vmul.f32 %v293, %v337
  %v513 = vmul.f32 %v294, %v338
  %v514 = vmul.f32 %v295, %v339
  %v515 = vmul.f32 %v296, %v340
  %v516 = vmul.f32 %v297, %v341
  %v517 = vmul.f32 %v298, %v342
  %v518 = vmul.f32 %v299, %v336
  %v519 = vmul.f32 %v300, %v337
  %v520 = vmul.f32 %v301, %v338
  %v521 = vmul.f32 %v302, %v339
  %v522 = vmul.f32 %v303, %v340
  %v523 = vmul.f32 %v304, %v341
  %v524 = vmul.f32 %v305, %v342
  %v525 = vmul.f32 %v306, %v336
  %v526 = vmul.f32 %v307, %v337
  %v527 = vmul.f32 %v308, %v338
  %v528 = vmul.f32 %v309, %v339
  %v529 = vmul.f32 %v310, %v340
  %v530 = vmul.f32 %v311, %v341
  %v531 = vmul.f32 %v312, %v342
  %v532 = vmul.f32 %v313, %v336
  %v533 = vmul.f32 %v314, %v337
  %v534 = vmul.f32 %v315, %v338
  %v535 = vmul.f32 %v316, %v339
  %v536 = vmul.f32 %v317, %v340
  %v537 = vmul.f32 %v318, %v341
  %v538 = vmul.f32 %v319, %v342
  %v539 = vmul.f32 %v320, %v336
  %v540 = vmul.f32 %v321, %v337
  %v541 = vmul.f32 %v322, %v338
  %v542 = vmul.f32 %v323, %v339
  %v543 = vmul.f32 %v324, %v340
  %v544 = vmul.f32 %v325, %v341
  %v545 = vmul.f32 %v326, %v342
  %v546 = vmul.f32 %v327, %v336
  %v547 = vmul.f32 %v328, %v337
  %v548 = vmul.f32 %v329, %v338
  %v549 = vmul.f32 %v330, %v339
  %v550 = vmul.f32 %v331, %v340
  %v551 = vmul.f32 %v332, %v341
  %v552 = vmul.f32 %v333, %v342
  %v553 = vpack.c.bf16 %v357, %v350
  %v554 = vpack.c.bf16 %v358, %v351
  %v555 = vpack.c.bf16 %v359, %v352
  %v556 = vpack.c.bf16 %v360, %v353
  %v557 = vpack.c.bf16 %v361, %v354
  %v558 = vpack.c.bf16 %v362, %v355
  %v559 = vpack.c.bf16 %v363, %v356
  %v560 = vpack.c.bf16 %v371, %v364
  %v561 = vpack.c.bf16 %v372, %v365
  %v562 = vpack.c.bf16 %v373, %v366
  %v563 = vpack.c.bf16 %v374, %v367
  %v564 = vpack.c.bf16 %v375, %v368
  %v565 = vpack.c.bf16 %v376, %v369
  %v566 = vpack.c.bf16 %v377, %v370
  %v567 = vpack.c.bf16 %v385, %v378
  %v568 = vpack.c.bf16 %v386, %v379
  %v569 = vpack.c.bf16 %v387, %v380
  %v570 = vpack.c.bf16 %v388, %v381
  %v571 = vpack.c.bf16 %v389, %v382
  %v572 = vpack.c.bf16 %v390, %v383
  %v573 = vpack.c.bf16 %v391, %v384
  %v574 = vpack.c.bf16 %v399, %v392
  %v575 = vpack.c.bf16 %v400, %v393
  %v576 = vpack.c.bf16 %v401, %v394
  %v577 = vpack.c.bf16 %v402, %v395
  %v578 = vpack.c.bf16 %v403, %v396
  %v579 = vpack.c.bf16 %v404, %v397
  %v580 = vpack.c.bf16 %v405, %v398
  %v581 = vpack.c.bf16 %v413, %v406
  %v582 = vpack.c.bf16 %v414, %v407
  %v583 = vpack.c.bf16 %v415, %v408
  %v584 = vpack.c.bf16 %v416, %v409
  %v585 = vpack.c.bf16 %v417, %v410
  %v586 = vpack.c.bf16 %v418, %v411
  %v587 = vpack.c.bf16 %v419, %v412
  %v588 = vpack.c.bf16 %v427, %v420
  %v589 = vpack.c.bf16 %v428, %v421
  %v590 = vpack.c.bf16 %v429, %v422
  %v591 = vpack.c.bf16 %v430, %v423
  %v592 = vpack.c.bf16 %v431, %v424
  %v593 = vpack.c.bf16 %v432, %v425
  %v594 = vpack.c.bf16 %v433, %v426
  %v595 = vpack.c.bf16 %v441, %v434
  %v596 = vpack.c.bf16 %v442, %v435
  %v597 = vpack.c.bf16 %v443, %v436
  %v598 = vpack.c.bf16 %v444, %v437
  %v599 = vpack.c.bf16 %v445, %v438
  %v600 = vpack.c.bf16 %v446, %v439
  %v601 = vpack.c.bf16 %v447, %v440
  %v602 = vpack.c.bf16 %v455, %v448
  %v603 = vpack.c.bf16 %v456, %v449
  %v604 = vpack.c.bf16 %v457, %v450
  %v605 = vpack.c.bf16 %v458, %v451
  %v606 = vpack.c.bf16 %v459, %v452
  %v607 = vpack.c.bf16 %v460, %v453
  %v608 = vpack.c.bf16 %v461, %v454
  %v609 = vpack.c.bf16 %v469, %v462
  %v610 = vpack.c.bf16 %v470, %v463
  %v611 = vpack.c.bf16 %v471, %v464
  %v612 = vpack.c.bf16 %v472, %v465
  %v613 = vpack.c.bf16 %v473, %v466
  %v614 = vpack.c.bf16 %v474, %v467
  %v615 = vpack.c.bf16 %v475, %v468
  %v616 = vpack.c.bf16 %v483, %v476
  %v617 = vpack.c.bf16 %v484, %v477
  %v618 = vpack.c.bf16 %v485, %v478
  %v619 = vpack.c.bf16 %v486, %v479
  %v620 = vpack.c.bf16 %v487, %v480
  %v621 = vpack.c.bf16 %v488, %v481
  %v622 = vpack.c.bf16 %v489, %v482
  %v623 = vpack.c.bf16 %v497, %v490
  %v624 = vpack.c.bf16 %v498, %v491
  %v625 = vpack.c.bf16 %v499, %v492
  %v626 = vpack.c.bf16 %v500, %v493
  %v627 = vpack.c.bf16 %v501, %v494
  %v628 = vpack.c.bf16 %v502, %v495
  %v629 = vpack.c.bf16 %v503, %v496
  %v630 = vpack.c.bf16 %v511, %v504
  %v631 = vpack.c.bf16 %v512, %v505
  %v632 = vpack.c.bf16 %v513, %v506
  %v633 = vpack.c.bf16 %v514, %v507
  %v634 = vpack.c.bf16 %v515, %v508
  %v635 = vpack.c.bf16 %v516, %v509
  %v636 = vpack.c.bf16 %v517, %v510
  %v637 = vpack.c.bf16 %v525, %v518
  %v638 = vpack.c.bf16 %v526, %v519
  %v639 = vpack.c.bf16 %v527, %v520
  %v640 = vpack.c.bf16 %v528, %v521
  %v641 = vpack.c.bf16 %v529, %v522
  %v642 = vpack.c.bf16 %v530, %v523
  %v643 = vpack.c.bf16 %v531, %v524
  %v644 = vpack.c.bf16 %v539, %v532
  %v645 = vpack.c.bf16 %v540, %v533
  %v646 = vpack.c.bf16 %v541, %v534
  %v647 = vpack.c.bf16 %v542, %v535
  %v648 = vpack.c.bf16 %v543, %v536
  %v649 = vpack.c.bf16 %v544, %v537
  %v650 = vpack.c.bf16 %v545, %v538
  %v651 = vpack.c.bf16 %v546, %v546
  %v652 = vpack.c.bf16 %v547, %v547
  %v653 = vpack.c.bf16 %v548, %v548
  %v654 = vpack.c.bf16 %v549, %v549
  %v655 = vpack.c.bf16 %v550, %v550
  %v656 = vpack.c.bf16 %v551, %v551
  %v657 = vpack.c.bf16 %v552, %v552
  %v658 = vld [vmem:[%s0] sm:$0xff]
  %v659 = vld [vmem:[%s0 + $0x8] sm:$0xff]
  %v660 = vld [vmem:[%s0 + $0x10] sm:$0xff]
  %v661 = vld [vmem:[%s0 + $0x18] sm:$0xff]
  %v662 = vld [vmem:[%s0 + $0x20] sm:$0xff]
  %v663 = vld [vmem:[%s0 + $0x28] sm:$0xff]
  %v664 = vld [vmem:[%s0 + $0x30] sm:$0xff]
  %v665 = vld [vmem:[%s0 + $0x38] sm:$0xff]
  %v666 = vld [vmem:[%s0 + $0x40] sm:$0xff]
  %v667 = vld [vmem:[%s0 + $0x48] sm:$0xff]
  %v668 = vld [vmem:[%s0 + $0x50] sm:$0xff]
  %v669 = vld [vmem:[%s0 + $0x58] sm:$0xff]
  %v670 = vld [vmem:[%s0 + $0x60] sm:$0xff]
  %v671 = vld [vmem:[%s0 + $0x68] sm:$0xff]
  %v672 = vld [vmem:[%s0 + $0x70] sm:$0xff]
  %v673 = vld [vmem:[%s0 + $0x78] sm:$0xff]
  %v674 = vld [vmem:[%s0 + $0x80] sm:$0xff]
  %v675 = vld [vmem:[%s0 + $0x88] sm:$0xff]
  %v676 = vld [vmem:[%s0 + $0x90] sm:$0xff]
  %v677 = vld [vmem:[%s0 + $0x98] sm:$0xff]
  %v678 = vld [vmem:[%s0 + $0xa0] sm:$0xff]
  %v679 = vld [vmem:[%s0 + $0xa8] sm:$0xff]
  %v680 = vld [vmem:[%s0 + $0xb0] sm:$0xff]
  %v681 = vld [vmem:[%s0 + $0xb8] sm:$0xff]
  %v682 = vld [vmem:[%s0 + $0xc0] sm:$0xff]
  %v683 = vld [vmem:[%s0 + $0xc8] sm:$0xff]
  %v684 = vld [vmem:[%s0 + $0xd0] sm:$0xff]
  %v685 = vld [vmem:[%s0 + $0xd8] sm:$0xff]
  %v686 = vld [vmem:[%s0 + $0xe0] sm:$0xff]
  %v687 = vld [vmem:[%s0 + $0xe8] sm:$0xff]
  %v688 = vld [vmem:[%s0 + $0xf0] sm:$0xff]
  %v689 = vld [vmem:[%s0 + $0xf8] sm:$0xff]
  %v690 = vld [vmem:[%s0 + $0x100] sm:$0xff]
  %v691 = vld [vmem:[%s0 + $0x108] sm:$0xff]
  %v692 = vld [vmem:[%s0 + $0x110] sm:$0xff]
  %v693 = vld [vmem:[%s0 + $0x118] sm:$0xff]
  %v694 = vld [vmem:[%s0 + $0x120] sm:$0xff]
  %v695 = vld [vmem:[%s0 + $0x128] sm:$0xff]
  %v696 = vld [vmem:[%s0 + $0x130] sm:$0xff]
  %v697 = vld [vmem:[%s0 + $0x138] sm:$0xff]
  %v698 = vld [vmem:[%s0 + $0x140] sm:$0xff]
  %v699 = vld [vmem:[%s0 + $0x148] sm:$0xff]
  %v700 = vld [vmem:[%s0 + $0x150] sm:$0xff]
  %v701 = vld [vmem:[%s0 + $0x158] sm:$0xff]
  %v702 = vld [vmem:[%s0 + $0x160] sm:$0xff]
  %v703 = vld [vmem:[%s0 + $0x168] sm:$0xff]
  %v704 = vld [vmem:[%s0 + $0x170] sm:$0xff]
  %v705 = vld [vmem:[%s0 + $0x178] sm:$0xff]
  %v706 = vld [vmem:[%s0 + $0x180] sm:$0xff]
  %v707 = vld [vmem:[%s0 + $0x188] sm:$0xff]
  %v708 = vld [vmem:[%s0 + $0x190] sm:$0xff]
  %v709 = vld [vmem:[%s0 + $0x198] sm:$0xff]
  %v710 = vld [vmem:[%s0 + $0x1a0] sm:$0xff]
  %v711 = vld [vmem:[%s0 + $0x1a8] sm:$0xff]
  %v712 = vld [vmem:[%s0 + $0x1b0] sm:$0xff]
  %v713 = vld [vmem:[%s0 + $0x1b8] sm:$0xff]
  %v714 = vld [vmem:[%s0 + $0x1c0] sm:$0xff]
  %v715 = vld [vmem:[%s0 + $0x1c8] sm:$0xff]
  %v716 = vld [vmem:[%s0 + $0x1d0] sm:$0xff]
  %v717 = vld [vmem:[%s0 + $0x1d8] sm:$0xff]
  %v718 = vld [vmem:[%s0 + $0x1e0] sm:$0xff]
  %v719 = vld [vmem:[%s0 + $0x1e8] sm:$0xff]
  %v720 = vld [vmem:[%s0 + $0x1f0] sm:$0xff]
  %v721 = vld [vmem:[%s0 + $0x1f8] sm:$0xff]
  %v722 = vld [vmem:[%s0 + $0x200] sm:$0xff]
  %v723 = vld [vmem:[%s0 + $0x208] sm:$0xff]
  %v724 = vld [vmem:[%s0 + $0x210] sm:$0xff]
  %v725 = vld [vmem:[%s0 + $0x218] sm:$0xff]
  %v726 = vld [vmem:[%s0 + $0x220] sm:$0xff]
  %v727 = vld [vmem:[%s0 + $0x228] sm:$0xff]
  %v728 = vld [vmem:[%s0 + $0x230] sm:$0xff]
  %v729 = vld [vmem:[%s0 + $0x238] sm:$0xff]
  %v730 = vld [vmem:[%s0 + $0x240] sm:$0xff]
  %v731 = vld [vmem:[%s0 + $0x248] sm:$0xff]
  %v732 = vld [vmem:[%s0 + $0x250] sm:$0xff]
  %v733 = vld [vmem:[%s0 + $0x258] sm:$0xff]
  %v734 = vld [vmem:[%s0 + $0x260] sm:$0xff]
  %v735 = vld [vmem:[%s0 + $0x268] sm:$0xff]
  %v736 = vld [vmem:[%s0 + $0x270] sm:$0xff]
  %v737 = vld [vmem:[%s0 + $0x278] sm:$0xff]
  %v738 = vld [vmem:[%s0 + $0x280] sm:$0xff]
  %v739 = vld [vmem:[%s0 + $0x288] sm:$0xff]
  %v740 = vld [vmem:[%s0 + $0x290] sm:$0xff]
  %v741 = vld [vmem:[%s0 + $0x298] sm:$0xff]
  %v742 = vld [vmem:[%s0 + $0x2a0] sm:$0xff]
  %v743 = vld [vmem:[%s0 + $0x2a8] sm:$0xff]
  %v744 = vld [vmem:[%s0 + $0x2b0] sm:$0xff]
  %v745 = vld [vmem:[%s0 + $0x2b8] sm:$0xff]
  %v746 = vld [vmem:[%s0 + $0x2c0] sm:$0xff]
  %v747 = vld [vmem:[%s0 + $0x2c8] sm:$0xff]
  %v748 = vld [vmem:[%s0 + $0x2d0] sm:$0xff]
  %v749 = vld [vmem:[%s0 + $0x2d8] sm:$0xff]
  %v750 = vld [vmem:[%s0 + $0x2e0] sm:$0xff]
  %v751 = vld [vmem:[%s0 + $0x2e8] sm:$0xff]
  %v752 = vld [vmem:[%s0 + $0x2f0] sm:$0xff]
  %v753 = vld [vmem:[%s0 + $0x2f8] sm:$0xff]
  %v754 = vld [vmem:[%s0 + $0x300] sm:$0xff]
  %v755 = vld [vmem:[%s0 + $0x308] sm:$0xff]
  %v756 = vld [vmem:[%s0 + $0x310] sm:$0xff]
  %v757 = vld [vmem:[%s0 + $0x318] sm:$0xff]
  %v758 = vld [vmem:[%s0 + $0x320] sm:$0xff]
  %v759 = vld [vmem:[%s0 + $0x328] sm:$0xff]
  %v760 = vpack.c.bf16 %v659, %v658
  %v761 = vpack.c.bf16 %v661, %v660
  %v762 = vpack.c.bf16 %v663, %v662
  %v763 = vpack.c.bf16 %v665, %v664
  %v764 = vpack.c.bf16 %v667, %v666
  %v765 = vpack.c.bf16 %v669, %v668
  %v766 = vpack.c.bf16 %v671, %v670
  %v767 = vpack.c.bf16 %v673, %v672
  %v768 = vpack.c.bf16 %v675, %v674
  %v769 = vpack.c.bf16 %v677, %v676
  %v770 = vpack.c.bf16 %v679, %v678
  %v771 = vpack.c.bf16 %v681, %v680
  %v772 = vpack.c.bf16 %v683, %v682
  %v773 = vpack.c.bf16 %v685, %v684
  %v774 = vpack.c.bf16 %v687, %v686
  %v775 = vpack.c.bf16 %v689, %v688
  %v776 = vpack.c.bf16 %v691, %v690
  %v777 = vpack.c.bf16 %v693, %v692
  %v778 = vpack.c.bf16 %v695, %v694
  %v779 = vpack.c.bf16 %v697, %v696
  %v780 = vpack.c.bf16 %v699, %v698
  %v781 = vpack.c.bf16 %v701, %v700
  %v782 = vpack.c.bf16 %v703, %v702
  %v783 = vpack.c.bf16 %v705, %v704
  %v784 = vpack.c.bf16 %v707, %v706
  %v785 = vpack.c.bf16 %v709, %v708
  %v786 = vpack.c.bf16 %v711, %v710
  %v787 = vpack.c.bf16 %v713, %v712
  %v788 = vpack.c.bf16 %v715, %v714
  %v789 = vpack.c.bf16 %v717, %v716
  %v790 = vpack.c.bf16 %v719, %v718
  %v791 = vpack.c.bf16 %v721, %v720
  %v792 = vpack.c.bf16 %v723, %v722
  %v793 = vpack.c.bf16 %v725, %v724
  %v794 = vpack.c.bf16 %v727, %v726
  %v795 = vpack.c.bf16 %v729, %v728
  %v796 = vpack.c.bf16 %v731, %v730
  %v797 = vpack.c.bf16 %v733, %v732
  %v798 = vpack.c.bf16 %v735, %v734
  %v799 = vpack.c.bf16 %v737, %v736
  %v800 = vpack.c.bf16 %v739, %v738
  %v801 = vpack.c.bf16 %v741, %v740
  %v802 = vpack.c.bf16 %v743, %v742
  %v803 = vpack.c.bf16 %v745, %v744
  %v804 = vpack.c.bf16 %v747, %v746
  %v805 = vpack.c.bf16 %v749, %v748
  %v806 = vpack.c.bf16 %v751, %v750
  %v807 = vpack.c.bf16 %v753, %v752
  %v808 = vpack.c.bf16 %v755, %v754
  %v809 = vpack.c.bf16 %v757, %v756
  %v810 = vpack.c.bf16 %v759, %v758
  %vm811 = vcmask 392192
  %v813 = vsel %vm811, %v559, 0
  %v816 = vsel %vm811, %v566, 0
  %v819 = vsel %vm811, %v573, 0
  %v822 = vsel %vm811, %v580, 0
  %v825 = vsel %vm811, %v587, 0
  %v828 = vsel %vm811, %v594, 0
  %v831 = vsel %vm811, %v601, 0
  %v834 = vsel %vm811, %v608, 0
  %v837 = vsel %vm811, %v615, 0
  %v840 = vsel %vm811, %v622, 0
  %v843 = vsel %vm811, %v629, 0
  %v846 = vsel %vm811, %v636, 0
  %v849 = vsel %vm811, %v643, 0
  %v852 = vsel %vm811, %v650, 0
  %v855 = vsel %vm811, %v657, 0
  %857 = vmatpush.bf16.msra.mxu0 %v767
  %858 = vmatpush.bf16.msra.mxu0 %v766
  %859 = vmatpush.bf16.msra.mxu0 %v765
  %860 = vmatpush.bf16.msra.mxu0 %v764
  %861 = vmatpush.bf16.msra.mxu0 %v763
  %862 = vmatpush.bf16.msra.mxu0 %v762
  %863 = vmatpush.bf16.msra.mxu0 %v761
  %864 = vmatpush.bf16.msra.mxu0 %v760
  %865 = vmatmul.bf16.gmra.mxu0 %v553
  %v866 = vpop.f32.mrf.mxu0
  %v867 = vadd.f32 0.0, %v866
  %v868 = vpop.f32.mrf.mxu0
  %v869 = vadd.f32 0.0, %v868
  %870 = vmatmul.bf16.gmra.mxu0 %v560
  %v871 = vpop.f32.mrf.mxu0
  %v872 = vadd.f32 0.0, %v871
  %v873 = vpop.f32.mrf.mxu0
  %v874 = vadd.f32 0.0, %v873
  %875 = vmatmul.bf16.gmra.mxu0 %v567
  %v876 = vpop.f32.mrf.mxu0
  %v877 = vadd.f32 0.0, %v876
  %v878 = vpop.f32.mrf.mxu0
  %v879 = vadd.f32 0.0, %v878
  %880 = vmatmul.bf16.gmra.mxu0 %v574
  %v881 = vpop.f32.mrf.mxu0
  %v882 = vadd.f32 0.0, %v881
  %v883 = vpop.f32.mrf.mxu0
  %v884 = vadd.f32 0.0, %v883
  %885 = vmatmul.bf16.gmra.mxu0 %v581
  %v886 = vpop.f32.mrf.mxu0
  %v887 = vadd.f32 0.0, %v886
  %v888 = vpop.f32.mrf.mxu0
  %v889 = vadd.f32 0.0, %v888
  %890 = vmatmul.bf16.gmra.mxu0 %v588
  %v891 = vpop.f32.mrf.mxu0
  %v892 = vadd.f32 0.0, %v891
  %v893 = vpop.f32.mrf.mxu0
  %v894 = vadd.f32 0.0, %v893
  %895 = vmatmul.bf16.gmra.mxu0 %v595
  %v896 = vpop.f32.mrf.mxu0
  %v897 = vadd.f32 0.0, %v896
  %v898 = vpop.f32.mrf.mxu0
  %v899 = vadd.f32 0.0, %v898
  %900 = vmatmul.bf16.gmra.mxu0 %v602
  %v901 = vpop.f32.mrf.mxu0
  %v902 = vadd.f32 0.0, %v901
  %v903 = vpop.f32.mrf.mxu0
  %v904 = vadd.f32 0.0, %v903
  %905 = vmatmul.bf16.gmra.mxu0 %v609
  %v906 = vpop.f32.mrf.mxu0
  %v907 = vadd.f32 0.0, %v906
  %v908 = vpop.f32.mrf.mxu0
  %v909 = vadd.f32 0.0, %v908
  %910 = vmatmul.bf16.gmra.mxu0 %v616
  %v911 = vpop.f32.mrf.mxu0
  %v912 = vadd.f32 0.0, %v911
  %v913 = vpop.f32.mrf.mxu0
  %v914 = vadd.f32 0.0, %v913
  %915 = vmatmul.bf16.gmra.mxu0 %v623
  %v916 = vpop.f32.mrf.mxu0
  %v917 = vadd.f32 0.0, %v916
  %v918 = vpop.f32.mrf.mxu0
  %v919 = vadd.f32 0.0, %v918
  %920 = vmatmul.bf16.gmra.mxu0 %v630
  %v921 = vpop.f32.mrf.mxu0
  %v922 = vadd.f32 0.0, %v921
  %v923 = vpop.f32.mrf.mxu0
  %v924 = vadd.f32 0.0, %v923
  %925 = vmatmul.bf16.gmra.mxu0 %v637
  %v926 = vpop.f32.mrf.mxu0
  %v927 = vadd.f32 0.0, %v926
  %v928 = vpop.f32.mrf.mxu0
  %v929 = vadd.f32 0.0, %v928
  %930 = vmatmul.bf16.gmra.mxu0 %v644
  %v931 = vpop.f32.mrf.mxu0
  %v932 = vadd.f32 0.0, %v931
  %v933 = vpop.f32.mrf.mxu0
  %v934 = vadd.f32 0.0, %v933
  %935 = vmatmul.bf16.gmra.mxu0 %v651
  %v936 = vpop.f32.mrf.mxu0
  %v937 = vadd.f32 0.0, %v936
  %v938 = vpop.f32.mrf.mxu0
  %939 = vdwg.mxu0
  %940 = vmatpush.bf16.msra.mxu0 %v775
  %941 = vmatpush.bf16.msra.mxu0 %v774
  %942 = vmatpush.bf16.msra.mxu0 %v773
  %943 = vmatpush.bf16.msra.mxu0 %v772
  %944 = vmatpush.bf16.msra.mxu0 %v771
  %945 = vmatpush.bf16.msra.mxu0 %v770
  %946 = vmatpush.bf16.msra.mxu0 %v769
  %947 = vmatpush.bf16.msra.mxu0 %v768
  %948 = vmatmul.bf16.gmra.mxu0 %v554
  %v949 = vpop.f32.mrf.mxu0
  %v950 = vadd.f32 %v867, %v949
  %v951 = vpop.f32.mrf.mxu0
  %v952 = vadd.f32 %v869, %v951
  %953 = vmatmul.bf16.gmra.mxu0 %v561
  %v954 = vpop.f32.mrf.mxu0
  %v955 = vadd.f32 %v872, %v954
  %v956 = vpop.f32.mrf.mxu0
  %v957 = vadd.f32 %v874, %v956
  %958 = vmatmul.bf16.gmra.mxu0 %v568
  %v959 = vpop.f32.mrf.mxu0
  %v960 = vadd.f32 %v877, %v959
  %v961 = vpop.f32.mrf.mxu0
  %v962 = vadd.f32 %v879, %v961
  %963 = vmatmul.bf16.gmra.mxu0 %v575
  %v964 = vpop.f32.mrf.mxu0
  %v965 = vadd.f32 %v882, %v964
  %v966 = vpop.f32.mrf.mxu0
  %v967 = vadd.f32 %v884, %v966
  %968 = vmatmul.bf16.gmra.mxu0 %v582
  %v969 = vpop.f32.mrf.mxu0
  %v970 = vadd.f32 %v887, %v969
  %v971 = vpop.f32.mrf.mxu0
  %v972 = vadd.f32 %v889, %v971
  %973 = vmatmul.bf16.gmra.mxu0 %v589
  %v974 = vpop.f32.mrf.mxu0
  %v975 = vadd.f32 %v892, %v974
  %v976 = vpop.f32.mrf.mxu0
  %v977 = vadd.f32 %v894, %v976
  %978 = vmatmul.bf16.gmra.mxu0 %v596
  %v979 = vpop.f32.mrf.mxu0
  %v980 = vadd.f32 %v897, %v979
  %v981 = vpop.f32.mrf.mxu0
  %v982 = vadd.f32 %v899, %v981
  %983 = vmatmul.bf16.gmra.mxu0 %v603
  %v984 = vpop.f32.mrf.mxu0
  %v985 = vadd.f32 %v902, %v984
  %v986 = vpop.f32.mrf.mxu0
  %v987 = vadd.f32 %v904, %v986
  %988 = vmatmul.bf16.gmra.mxu0 %v610
  %v989 = vpop.f32.mrf.mxu0
  %v990 = vadd.f32 %v907, %v989
  %v991 = vpop.f32.mrf.mxu0
  %v992 = vadd.f32 %v909, %v991
  %993 = vmatmul.bf16.gmra.mxu0 %v617
  %v994 = vpop.f32.mrf.mxu0
  %v995 = vadd.f32 %v912, %v994
  %v996 = vpop.f32.mrf.mxu0
  %v997 = vadd.f32 %v914, %v996
  %998 = vmatmul.bf16.gmra.mxu0 %v624
  %v999 = vpop.f32.mrf.mxu0
  %v1000 = vadd.f32 %v917, %v999
  %v1001 = vpop.f32.mrf.mxu0
  %v1002 = vadd.f32 %v919, %v1001
  %1003 = vmatmul.bf16.gmra.mxu0 %v631
  %v1004 = vpop.f32.mrf.mxu0
  %v1005 = vadd.f32 %v922, %v1004
  %v1006 = vpop.f32.mrf.mxu0
  %v1007 = vadd.f32 %v924, %v1006
  %1008 = vmatmul.bf16.gmra.mxu0 %v638
  %v1009 = vpop.f32.mrf.mxu0
  %v1010 = vadd.f32 %v927, %v1009
  %v1011 = vpop.f32.mrf.mxu0
  %v1012 = vadd.f32 %v929, %v1011
  %1013 = vmatmul.bf16.gmra.mxu0 %v645
  %v1014 = vpop.f32.mrf.mxu0
  %v1015 = vadd.f32 %v932, %v1014
  %v1016 = vpop.f32.mrf.mxu0
  %v1017 = vadd.f32 %v934, %v1016
  %1018 = vmatmul.bf16.gmra.mxu0 %v652
  %v1019 = vpop.f32.mrf.mxu0
  %v1020 = vadd.f32 %v937, %v1019
  %v1021 = vpop.f32.mrf.mxu0
  %1022 = vdwg.mxu0
  %1023 = vmatpush.bf16.msra.mxu0 %v783
  %1024 = vmatpush.bf16.msra.mxu0 %v782
  %1025 = vmatpush.bf16.msra.mxu0 %v781
  %1026 = vmatpush.bf16.msra.mxu0 %v780
  %1027 = vmatpush.bf16.msra.mxu0 %v779
  %1028 = vmatpush.bf16.msra.mxu0 %v778
  %1029 = vmatpush.bf16.msra.mxu0 %v777
  %1030 = vmatpush.bf16.msra.mxu0 %v776
  %1031 = vmatmul.bf16.gmra.mxu0 %v555
  %v1032 = vpop.f32.mrf.mxu0
  %v1033 = vadd.f32 %v950, %v1032
  %v1034 = vpop.f32.mrf.mxu0
  %v1035 = vadd.f32 %v952, %v1034
  %1036 = vmatmul.bf16.gmra.mxu0 %v562
  %v1037 = vpop.f32.mrf.mxu0
  %v1038 = vadd.f32 %v955, %v1037
  %v1039 = vpop.f32.mrf.mxu0
  %v1040 = vadd.f32 %v957, %v1039
  %1041 = vmatmul.bf16.gmra.mxu0 %v569
  %v1042 = vpop.f32.mrf.mxu0
  %v1043 = vadd.f32 %v960, %v1042
  %v1044 = vpop.f32.mrf.mxu0
  %v1045 = vadd.f32 %v962, %v1044
  %1046 = vmatmul.bf16.gmra.mxu0 %v576
  %v1047 = vpop.f32.mrf.mxu0
  %v1048 = vadd.f32 %v965, %v1047
  %v1049 = vpop.f32.mrf.mxu0
  %v1050 = vadd.f32 %v967, %v1049
  %1051 = vmatmul.bf16.gmra.mxu0 %v583
  %v1052 = vpop.f32.mrf.mxu0
  %v1053 = vadd.f32 %v970, %v1052
  %v1054 = vpop.f32.mrf.mxu0
  %v1055 = vadd.f32 %v972, %v1054
  %1056 = vmatmul.bf16.gmra.mxu0 %v590
  %v1057 = vpop.f32.mrf.mxu0
  %v1058 = vadd.f32 %v975, %v1057
  %v1059 = vpop.f32.mrf.mxu0
  %v1060 = vadd.f32 %v977, %v1059
  %1061 = vmatmul.bf16.gmra.mxu0 %v597
  %v1062 = vpop.f32.mrf.mxu0
  %v1063 = vadd.f32 %v980, %v1062
  %v1064 = vpop.f32.mrf.mxu0
  %v1065 = vadd.f32 %v982, %v1064
  %1066 = vmatmul.bf16.gmra.mxu0 %v604
  %v1067 = vpop.f32.mrf.mxu0
  %v1068 = vadd.f32 %v985, %v1067
  %v1069 = vpop.f32.mrf.mxu0
  %v1070 = vadd.f32 %v987, %v1069
  %1071 = vmatmul.bf16.gmra.mxu0 %v611
  %v1072 = vpop.f32.mrf.mxu0
  %v1073 = vadd.f32 %v990, %v1072
  %v1074 = vpop.f32.mrf.mxu0
  %v1075 = vadd.f32 %v992, %v1074
  %1076 = vmatmul.bf16.gmra.mxu0 %v618
  %v1077 = vpop.f32.mrf.mxu0
  %v1078 = vadd.f32 %v995, %v1077
  %v1079 = vpop.f32.mrf.mxu0
  %v1080 = vadd.f32 %v997, %v1079
  %1081 = vmatmul.bf16.gmra.mxu0 %v625
  %v1082 = vpop.f32.mrf.mxu0
  %v1083 = vadd.f32 %v1000, %v1082
  %v1084 = vpop.f32.mrf.mxu0
  %v1085 = vadd.f32 %v1002, %v1084
  %1086 = vmatmul.bf16.gmra.mxu0 %v632
  %v1087 = vpop.f32.mrf.mxu0
  %v1088 = vadd.f32 %v1005, %v1087
  %v1089 = vpop.f32.mrf.mxu0
  %v1090 = vadd.f32 %v1007, %v1089
  %1091 = vmatmul.bf16.gmra.mxu0 %v639
  %v1092 = vpop.f32.mrf.mxu0
  %v1093 = vadd.f32 %v1010, %v1092
  %v1094 = vpop.f32.mrf.mxu0
  %v1095 = vadd.f32 %v1012, %v1094
  %1096 = vmatmul.bf16.gmra.mxu0 %v646
  %v1097 = vpop.f32.mrf.mxu0
  %v1098 = vadd.f32 %v1015, %v1097
  %v1099 = vpop.f32.mrf.mxu0
  %v1100 = vadd.f32 %v1017, %v1099
  %1101 = vmatmul.bf16.gmra.mxu0 %v653
  %v1102 = vpop.f32.mrf.mxu0
  %v1103 = vadd.f32 %v1020, %v1102
  %v1104 = vpop.f32.mrf.mxu0
  %1105 = vdwg.mxu0
  %1106 = vmatpush.bf16.msra.mxu0 %v791
  %1107 = vmatpush.bf16.msra.mxu0 %v790
  %1108 = vmatpush.bf16.msra.mxu0 %v789
  %1109 = vmatpush.bf16.msra.mxu0 %v788
  %1110 = vmatpush.bf16.msra.mxu0 %v787
  %1111 = vmatpush.bf16.msra.mxu0 %v786
  %1112 = vmatpush.bf16.msra.mxu0 %v785
  %1113 = vmatpush.bf16.msra.mxu0 %v784
  %1114 = vmatmul.bf16.gmra.mxu0 %v556
  %v1115 = vpop.f32.mrf.mxu0
  %v1116 = vadd.f32 %v1033, %v1115
  %v1117 = vpop.f32.mrf.mxu0
  %v1118 = vadd.f32 %v1035, %v1117
  %1119 = vmatmul.bf16.gmra.mxu0 %v563
  %v1120 = vpop.f32.mrf.mxu0
  %v1121 = vadd.f32 %v1038, %v1120
  %v1122 = vpop.f32.mrf.mxu0
  %v1123 = vadd.f32 %v1040, %v1122
  %1124 = vmatmul.bf16.gmra.mxu0 %v570
  %v1125 = vpop.f32.mrf.mxu0
  %v1126 = vadd.f32 %v1043, %v1125
  %v1127 = vpop.f32.mrf.mxu0
  %v1128 = vadd.f32 %v1045, %v1127
  %1129 = vmatmul.bf16.gmra.mxu0 %v577
  %v1130 = vpop.f32.mrf.mxu0
  %v1131 = vadd.f32 %v1048, %v1130
  %v1132 = vpop.f32.mrf.mxu0
  %v1133 = vadd.f32 %v1050, %v1132
  %1134 = vmatmul.bf16.gmra.mxu0 %v584
  %v1135 = vpop.f32.mrf.mxu0
  %v1136 = vadd.f32 %v1053, %v1135
  %v1137 = vpop.f32.mrf.mxu0
  %v1138 = vadd.f32 %v1055, %v1137
  %1139 = vmatmul.bf16.gmra.mxu0 %v591
  %v1140 = vpop.f32.mrf.mxu0
  %v1141 = vadd.f32 %v1058, %v1140
  %v1142 = vpop.f32.mrf.mxu0
  %v1143 = vadd.f32 %v1060, %v1142
  %1144 = vmatmul.bf16.gmra.mxu0 %v598
  %v1145 = vpop.f32.mrf.mxu0
  %v1146 = vadd.f32 %v1063, %v1145
  %v1147 = vpop.f32.mrf.mxu0
  %v1148 = vadd.f32 %v1065, %v1147
  %1149 = vmatmul.bf16.gmra.mxu0 %v605
  %v1150 = vpop.f32.mrf.mxu0
  %v1151 = vadd.f32 %v1068, %v1150
  %v1152 = vpop.f32.mrf.mxu0
  %v1153 = vadd.f32 %v1070, %v1152
  %1154 = vmatmul.bf16.gmra.mxu0 %v612
  %v1155 = vpop.f32.mrf.mxu0
  %v1156 = vadd.f32 %v1073, %v1155
  %v1157 = vpop.f32.mrf.mxu0
  %v1158 = vadd.f32 %v1075, %v1157
  %1159 = vmatmul.bf16.gmra.mxu0 %v619
  %v1160 = vpop.f32.mrf.mxu0
  %v1161 = vadd.f32 %v1078, %v1160
  %v1162 = vpop.f32.mrf.mxu0
  %v1163 = vadd.f32 %v1080, %v1162
  %1164 = vmatmul.bf16.gmra.mxu0 %v626
  %v1165 = vpop.f32.mrf.mxu0
  %v1166 = vadd.f32 %v1083, %v1165
  %v1167 = vpop.f32.mrf.mxu0
  %v1168 = vadd.f32 %v1085, %v1167
  %1169 = vmatmul.bf16.gmra.mxu0 %v633
  %v1170 = vpop.f32.mrf.mxu0
  %v1171 = vadd.f32 %v1088, %v1170
  %v1172 = vpop.f32.mrf.mxu0
  %v1173 = vadd.f32 %v1090, %v1172
  %1174 = vmatmul.bf16.gmra.mxu0 %v640
  %v1175 = vpop.f32.mrf.mxu0
  %v1176 = vadd.f32 %v1093, %v1175
  %v1177 = vpop.f32.mrf.mxu0
  %v1178 = vadd.f32 %v1095, %v1177
  %1179 = vmatmul.bf16.gmra.mxu0 %v647
  %v1180 = vpop.f32.mrf.mxu0
  %v1181 = vadd.f32 %v1098, %v1180
  %v1182 = vpop.f32.mrf.mxu0
  %v1183 = vadd.f32 %v1100, %v1182
  %1184 = vmatmul.bf16.gmra.mxu0 %v654
  %v1185 = vpop.f32.mrf.mxu0
  %v1186 = vadd.f32 %v1103, %v1185
  %v1187 = vpop.f32.mrf.mxu0
  %1188 = vdwg.mxu0
  %1189 = vmatpush.bf16.msra.mxu0 %v799
  %1190 = vmatpush.bf16.msra.mxu0 %v798
  %1191 = vmatpush.bf16.msra.mxu0 %v797
  %1192 = vmatpush.bf16.msra.mxu0 %v796
  %1193 = vmatpush.bf16.msra.mxu0 %v795
  %1194 = vmatpush.bf16.msra.mxu0 %v794
  %1195 = vmatpush.bf16.msra.mxu0 %v793
  %1196 = vmatpush.bf16.msra.mxu0 %v792
  %1197 = vmatmul.bf16.gmra.mxu0 %v557
  %v1198 = vpop.f32.mrf.mxu0
  %v1199 = vadd.f32 %v1116, %v1198
  %v1200 = vpop.f32.mrf.mxu0
  %v1201 = vadd.f32 %v1118, %v1200
  %1202 = vmatmul.bf16.gmra.mxu0 %v564
  %v1203 = vpop.f32.mrf.mxu0
  %v1204 = vadd.f32 %v1121, %v1203
  %v1205 = vpop.f32.mrf.mxu0
  %v1206 = vadd.f32 %v1123, %v1205
  %1207 = vmatmul.bf16.gmra.mxu0 %v571
  %v1208 = vpop.f32.mrf.mxu0
  %v1209 = vadd.f32 %v1126, %v1208
  %v1210 = vpop.f32.mrf.mxu0
  %v1211 = vadd.f32 %v1128, %v1210
  %1212 = vmatmul.bf16.gmra.mxu0 %v578
  %v1213 = vpop.f32.mrf.mxu0
  %v1214 = vadd.f32 %v1131, %v1213
  %v1215 = vpop.f32.mrf.mxu0
  %v1216 = vadd.f32 %v1133, %v1215
  %1217 = vmatmul.bf16.gmra.mxu0 %v585
  %v1218 = vpop.f32.mrf.mxu0
  %v1219 = vadd.f32 %v1136, %v1218
  %v1220 = vpop.f32.mrf.mxu0
  %v1221 = vadd.f32 %v1138, %v1220
  %1222 = vmatmul.bf16.gmra.mxu0 %v592
  %v1223 = vpop.f32.mrf.mxu0
  %v1224 = vadd.f32 %v1141, %v1223
  %v1225 = vpop.f32.mrf.mxu0
  %v1226 = vadd.f32 %v1143, %v1225
  %1227 = vmatmul.bf16.gmra.mxu0 %v599
  %v1228 = vpop.f32.mrf.mxu0
  %v1229 = vadd.f32 %v1146, %v1228
  %v1230 = vpop.f32.mrf.mxu0
  %v1231 = vadd.f32 %v1148, %v1230
  %1232 = vmatmul.bf16.gmra.mxu0 %v606
  %v1233 = vpop.f32.mrf.mxu0
  %v1234 = vadd.f32 %v1151, %v1233
  %v1235 = vpop.f32.mrf.mxu0
  %v1236 = vadd.f32 %v1153, %v1235
  %1237 = vmatmul.bf16.gmra.mxu0 %v613
  %v1238 = vpop.f32.mrf.mxu0
  %v1239 = vadd.f32 %v1156, %v1238
  %v1240 = vpop.f32.mrf.mxu0
  %v1241 = vadd.f32 %v1158, %v1240
  %1242 = vmatmul.bf16.gmra.mxu0 %v620
  %v1243 = vpop.f32.mrf.mxu0
  %v1244 = vadd.f32 %v1161, %v1243
  %v1245 = vpop.f32.mrf.mxu0
  %v1246 = vadd.f32 %v1163, %v1245
  %1247 = vmatmul.bf16.gmra.mxu0 %v627
  %v1248 = vpop.f32.mrf.mxu0
  %v1249 = vadd.f32 %v1166, %v1248
  %v1250 = vpop.f32.mrf.mxu0
  %v1251 = vadd.f32 %v1168, %v1250
  %1252 = vmatmul.bf16.gmra.mxu0 %v634
  %v1253 = vpop.f32.mrf.mxu0
  %v1254 = vadd.f32 %v1171, %v1253
  %v1255 = vpop.f32.mrf.mxu0
  %v1256 = vadd.f32 %v1173, %v1255
  %1257 = vmatmul.bf16.gmra.mxu0 %v641
  %v1258 = vpop.f32.mrf.mxu0
  %v1259 = vadd.f32 %v1176, %v1258
  %v1260 = vpop.f32.mrf.mxu0
  %v1261 = vadd.f32 %v1178, %v1260
  %1262 = vmatmul.bf16.gmra.mxu0 %v648
  %v1263 = vpop.f32.mrf.mxu0
  %v1264 = vadd.f32 %v1181, %v1263
  %v1265 = vpop.f32.mrf.mxu0
  %v1266 = vadd.f32 %v1183, %v1265
  %1267 = vmatmul.bf16.gmra.mxu0 %v655
  %v1268 = vpop.f32.mrf.mxu0
  %v1269 = vadd.f32 %v1186, %v1268
  %v1270 = vpop.f32.mrf.mxu0
  %1271 = vdwg.mxu0
  %1272 = vmatpush.bf16.msra.mxu0 %v807
  %1273 = vmatpush.bf16.msra.mxu0 %v806
  %1274 = vmatpush.bf16.msra.mxu0 %v805
  %1275 = vmatpush.bf16.msra.mxu0 %v804
  %1276 = vmatpush.bf16.msra.mxu0 %v803
  %1277 = vmatpush.bf16.msra.mxu0 %v802
  %1278 = vmatpush.bf16.msra.mxu0 %v801
  %1279 = vmatpush.bf16.msra.mxu0 %v800
  %1280 = vmatmul.bf16.gmra.mxu0 %v558
  %v1281 = vpop.f32.mrf.mxu0
  %v1282 = vadd.f32 %v1199, %v1281
  %v1283 = vpop.f32.mrf.mxu0
  %v1284 = vadd.f32 %v1201, %v1283
  %1285 = vmatmul.bf16.gmra.mxu0 %v565
  %v1286 = vpop.f32.mrf.mxu0
  %v1287 = vadd.f32 %v1204, %v1286
  %v1288 = vpop.f32.mrf.mxu0
  %v1289 = vadd.f32 %v1206, %v1288
  %1290 = vmatmul.bf16.gmra.mxu0 %v572
  %v1291 = vpop.f32.mrf.mxu0
  %v1292 = vadd.f32 %v1209, %v1291
  %v1293 = vpop.f32.mrf.mxu0
  %v1294 = vadd.f32 %v1211, %v1293
  %1295 = vmatmul.bf16.gmra.mxu0 %v579
  %v1296 = vpop.f32.mrf.mxu0
  %v1297 = vadd.f32 %v1214, %v1296
  %v1298 = vpop.f32.mrf.mxu0
  %v1299 = vadd.f32 %v1216, %v1298
  %1300 = vmatmul.bf16.gmra.mxu0 %v586
  %v1301 = vpop.f32.mrf.mxu0
  %v1302 = vadd.f32 %v1219, %v1301
  %v1303 = vpop.f32.mrf.mxu0
  %v1304 = vadd.f32 %v1221, %v1303
  %1305 = vmatmul.bf16.gmra.mxu0 %v593
  %v1306 = vpop.f32.mrf.mxu0
  %v1307 = vadd.f32 %v1224, %v1306
  %v1308 = vpop.f32.mrf.mxu0
  %v1309 = vadd.f32 %v1226, %v1308
  %1310 = vmatmul.bf16.gmra.mxu0 %v600
  %v1311 = vpop.f32.mrf.mxu0
  %v1312 = vadd.f32 %v1229, %v1311
  %v1313 = vpop.f32.mrf.mxu0
  %v1314 = vadd.f32 %v1231, %v1313
  %1315 = vmatmul.bf16.gmra.mxu0 %v607
  %v1316 = vpop.f32.mrf.mxu0
  %v1317 = vadd.f32 %v1234, %v1316
  %v1318 = vpop.f32.mrf.mxu0
  %v1319 = vadd.f32 %v1236, %v1318
  %1320 = vmatmul.bf16.gmra.mxu0 %v614
  %v1321 = vpop.f32.mrf.mxu0
  %v1322 = vadd.f32 %v1239, %v1321
  %v1323 = vpop.f32.mrf.mxu0
  %v1324 = vadd.f32 %v1241, %v1323
  %1325 = vmatmul.bf16.gmra.mxu0 %v621
  %v1326 = vpop.f32.mrf.mxu0
  %v1327 = vadd.f32 %v1244, %v1326
  %v1328 = vpop.f32.mrf.mxu0
  %v1329 = vadd.f32 %v1246, %v1328
  %1330 = vmatmul.bf16.gmra.mxu0 %v628
  %v1331 = vpop.f32.mrf.mxu0
  %v1332 = vadd.f32 %v1249, %v1331
  %v1333 = vpop.f32.mrf.mxu0
  %v1334 = vadd.f32 %v1251, %v1333
  %1335 = vmatmul.bf16.gmra.mxu0 %v635
  %v1336 = vpop.f32.mrf.mxu0
  %v1337 = vadd.f32 %v1254, %v1336
  %v1338 = vpop.f32.mrf.mxu0
  %v1339 = vadd.f32 %v1256, %v1338
  %1340 = vmatmul.bf16.gmra.mxu0 %v642
  %v1341 = vpop.f32.mrf.mxu0
  %v1342 = vadd.f32 %v1259, %v1341
  %v1343 = vpop.f32.mrf.mxu0
  %v1344 = vadd.f32 %v1261, %v1343
  %1345 = vmatmul.bf16.gmra.mxu0 %v649
  %v1346 = vpop.f32.mrf.mxu0
  %v1347 = vadd.f32 %v1264, %v1346
  %v1348 = vpop.f32.mrf.mxu0
  %v1349 = vadd.f32 %v1266, %v1348
  %1350 = vmatmul.bf16.gmra.mxu0 %v656
  %v1351 = vpop.f32.mrf.mxu0
  %v1352 = vadd.f32 %v1269, %v1351
  %v1353 = vpop.f32.mrf.mxu0
  %1354 = vdwg.mxu0
  %1355 = vmatpush.bf16.msra.mxu0 0
  %1356 = vmatpush.bf16.msra.mxu0 0
  %1357 = vmatpush.bf16.msra.mxu0 0
  %1358 = vmatpush.bf16.msra.mxu0 0
  %1359 = vmatpush.bf16.msra.mxu0 0
  %1360 = vmatpush.bf16.msra.mxu0 %v810
  %1361 = vmatpush.bf16.msra.mxu0 %v809
  %1362 = vmatpush.bf16.msra.mxu0 %v808
  %1363 = vmatmul.bf16.gmra.mxu0 %v813
  %v1364 = vpop.f32.mrf.mxu0
  %v1365 = vadd.f32 %v1282, %v1364
  %v1366 = vpop.f32.mrf.mxu0
  %v1367 = vadd.f32 %v1284, %v1366
  %1368 = vmatmul.bf16.gmra.mxu0 %v816
  %v1369 = vpop.f32.mrf.mxu0
  %v1370 = vadd.f32 %v1287, %v1369
  %v1371 = vpop.f32.mrf.mxu0
  %v1372 = vadd.f32 %v1289, %v1371
  %1373 = vmatmul.bf16.gmra.mxu0 %v819
  %v1374 = vpop.f32.mrf.mxu0
  %v1375 = vadd.f32 %v1292, %v1374
  %v1376 = vpop.f32.mrf.mxu0
  %v1377 = vadd.f32 %v1294, %v1376
  %1378 = vmatmul.bf16.gmra.mxu0 %v822
  %v1379 = vpop.f32.mrf.mxu0
  %v1380 = vadd.f32 %v1297, %v1379
  %v1381 = vpop.f32.mrf.mxu0
  %v1382 = vadd.f32 %v1299, %v1381
  %1383 = vmatmul.bf16.gmra.mxu0 %v825
  %v1384 = vpop.f32.mrf.mxu0
  %v1385 = vadd.f32 %v1302, %v1384
  %v1386 = vpop.f32.mrf.mxu0
  %v1387 = vadd.f32 %v1304, %v1386
  %1388 = vmatmul.bf16.gmra.mxu0 %v828
  %v1389 = vpop.f32.mrf.mxu0
  %v1390 = vadd.f32 %v1307, %v1389
  %v1391 = vpop.f32.mrf.mxu0
  %v1392 = vadd.f32 %v1309, %v1391
  %1393 = vmatmul.bf16.gmra.mxu0 %v831
  %v1394 = vpop.f32.mrf.mxu0
  %v1395 = vadd.f32 %v1312, %v1394
  %v1396 = vpop.f32.mrf.mxu0
  %v1397 = vadd.f32 %v1314, %v1396
  %1398 = vmatmul.bf16.gmra.mxu0 %v834
  %v1399 = vpop.f32.mrf.mxu0
  %v1400 = vadd.f32 %v1317, %v1399
  %v1401 = vpop.f32.mrf.mxu0
  %v1402 = vadd.f32 %v1319, %v1401
  %1403 = vmatmul.bf16.gmra.mxu0 %v837
  %v1404 = vpop.f32.mrf.mxu0
  %v1405 = vadd.f32 %v1322, %v1404
  %v1406 = vpop.f32.mrf.mxu0
  %v1407 = vadd.f32 %v1324, %v1406
  %1408 = vmatmul.bf16.gmra.mxu0 %v840
  %v1409 = vpop.f32.mrf.mxu0
  %v1410 = vadd.f32 %v1327, %v1409
  %v1411 = vpop.f32.mrf.mxu0
  %v1412 = vadd.f32 %v1329, %v1411
  %1413 = vmatmul.bf16.gmra.mxu0 %v843
  %v1414 = vpop.f32.mrf.mxu0
  %v1415 = vadd.f32 %v1332, %v1414
  %v1416 = vpop.f32.mrf.mxu0
  %v1417 = vadd.f32 %v1334, %v1416
  %1418 = vmatmul.bf16.gmra.mxu0 %v846
  %v1419 = vpop.f32.mrf.mxu0
  %v1420 = vadd.f32 %v1337, %v1419
  %v1421 = vpop.f32.mrf.mxu0
  %v1422 = vadd.f32 %v1339, %v1421
  %1423 = vmatmul.bf16.gmra.mxu0 %v849
  %v1424 = vpop.f32.mrf.mxu0
  %v1425 = vadd.f32 %v1342, %v1424
  %v1426 = vpop.f32.mrf.mxu0
  %v1427 = vadd.f32 %v1344, %v1426
  %1428 = vmatmul.bf16.gmra.mxu0 %v852
  %v1429 = vpop.f32.mrf.mxu0
  %v1430 = vadd.f32 %v1347, %v1429
  %v1431 = vpop.f32.mrf.mxu0
  %v1432 = vadd.f32 %v1349, %v1431
  %1433 = vmatmul.bf16.gmra.mxu0 %v855
  %v1434 = vpop.f32.mrf.mxu0
  %v1435 = vadd.f32 %v1352, %v1434
  %v1436 = vpop.f32.mrf.mxu0
  %1437 = vdwg.mxu0
  %vm1438 = vcmask 400384
  %1439 = vst.msk [vmem:[%s3] sm:$0xff] %vm1438, %v1365
  %1440 = vst.msk [vmem:[%s3 + $0x8] sm:$0xff] %vm1438, %v1367
  %1441 = vst.msk [vmem:[%s3 + $0x10] sm:$0xff] %vm1438, %v1370
  %1442 = vst.msk [vmem:[%s3 + $0x18] sm:$0xff] %vm1438, %v1372
  %1443 = vst.msk [vmem:[%s3 + $0x20] sm:$0xff] %vm1438, %v1375
  %1444 = vst.msk [vmem:[%s3 + $0x28] sm:$0xff] %vm1438, %v1377
  %1445 = vst.msk [vmem:[%s3 + $0x30] sm:$0xff] %vm1438, %v1380
  %1446 = vst.msk [vmem:[%s3 + $0x38] sm:$0xff] %vm1438, %v1382
  %1447 = vst.msk [vmem:[%s3 + $0x40] sm:$0xff] %vm1438, %v1385
  %1448 = vst.msk [vmem:[%s3 + $0x48] sm:$0xff] %vm1438, %v1387
  %1449 = vst.msk [vmem:[%s3 + $0x50] sm:$0xff] %vm1438, %v1390
  %1450 = vst.msk [vmem:[%s3 + $0x58] sm:$0xff] %vm1438, %v1392
  %1451 = vst.msk [vmem:[%s3 + $0x60] sm:$0xff] %vm1438, %v1395
  %1452 = vst.msk [vmem:[%s3 + $0x68] sm:$0xff] %vm1438, %v1397
  %1453 = vst.msk [vmem:[%s3 + $0x70] sm:$0xff] %vm1438, %v1400
  %1454 = vst.msk [vmem:[%s3 + $0x78] sm:$0xff] %vm1438, %v1402
  %1455 = vst.msk [vmem:[%s3 + $0x80] sm:$0xff] %vm1438, %v1405
  %1456 = vst.msk [vmem:[%s3 + $0x88] sm:$0xff] %vm1438, %v1407
  %1457 = vst.msk [vmem:[%s3 + $0x90] sm:$0xff] %vm1438, %v1410
  %1458 = vst.msk [vmem:[%s3 + $0x98] sm:$0xff] %vm1438, %v1412
  %1459 = vst.msk [vmem:[%s3 + $0xa0] sm:$0xff] %vm1438, %v1415
  %1460 = vst.msk [vmem:[%s3 + $0xa8] sm:$0xff] %vm1438, %v1417
  %1461 = vst.msk [vmem:[%s3 + $0xb0] sm:$0xff] %vm1438, %v1420
  %1462 = vst.msk [vmem:[%s3 + $0xb8] sm:$0xff] %vm1438, %v1422
  %1463 = vst.msk [vmem:[%s3 + $0xc0] sm:$0xff] %vm1438, %v1425
  %1464 = vst.msk [vmem:[%s3 + $0xc8] sm:$0xff] %vm1438, %v1427
  %1465 = vst.msk [vmem:[%s3 + $0xd0] sm:$0xff] %vm1438, %v1430
  %1466 = vst.msk [vmem:[%s3 + $0xd8] sm:$0xff] %vm1438, %v1432
  %1467 = vst.msk [vmem:[%s3 + $0xe0] sm:$0xff] %vm1438, %v1435
  // Predicated region
  $region14: #{tpu_custom_call.1} parent=0 // pred_check
    _
  $region15: #{tpu_custom_call.1} parent=0 // pred_check_branch
    %1469 = sbr.rel (0) target = $region17
  $region16: #{tpu_custom_call.1} parent=0 // pred_region
    _
  $region17: #{tpu_custom_call.1} parent=0 // pred_fallthru
    _
  // Predicated region
  $region18: #{tpu_custom_call.1} parent=0 // pred_check
    _
  $region19: #{tpu_custom_call.1} parent=0 // pred_check_branch
    %1471 = sbr.rel (0) target = $region21
  $region20: #{tpu_custom_call.1} parent=0 // pred_region
    _
  $region21: #{tpu_custom_call.1} parent=0 // pred_fallthru
    _

</llo_original>
